<compile_context>
chip_gen: v7x
topology: tpu7x:2x2x1
jax: 0.10.0
libtpu: 0.0.40
codegen_flags: <defaults>
</compile_context>

<pallas_src>
import functools

import jax
import jax.numpy as jnp
from jax.experimental import pallas as pl
from jax.experimental.pallas import tpu as pltpu


def _mlp_kernel(x_ref, w1_ref, b1_ref, w2_ref, b2_ref, o_ref):
    # linear1 (MXU, K = pack*n0, lane-dense) + bias + ReLU (VPU).
    h = jnp.dot(x_ref[...], w1_ref[...], preferred_element_type=jnp.float32)
    h = jnp.maximum(h + b1_ref[...], 0.0)

    # dropout: identity in eval mode.

    # linear2 (MXU) + bias + sigmoid (EUP).
    y = jnp.dot(h, w2_ref[...], preferred_element_type=jnp.float32)
    o_ref[...] = jax.nn.sigmoid(y + b2_ref[...])


def _round_up(a, m):
    return ((a + m - 1) // m) * m


@functools.partial(jax.jit, static_argnames=("block_b",))
def tpt_model_forward(x, w1, b1, w2, b2, *, block_b=4096):
    """x: (B, n0) f32; w1: (n1, n0); b1: (n1,); w2: (n2, n1); b2: (n2,).

    Weights arrive in PyTorch (out, in) layout; they are transposed and
    block-diagonalized once here (outside the kernel) so the kernel body is
    transpose-free and both the x loads and the output stores are packed.
    """
    B, n0 = x.shape
    n1 = w1.shape[0]
    n2 = w2.shape[0]
    dt = jnp.float32

    # --- sample packing: `pack` samples share one 128-lane row ----------------
    pack = max(1, 128 // max(n0, 1))          # 8 for the default n0=16
    L0, L1, L2 = pack * n0, pack * n1, pack * n2

    b8 = _round_up(B, pack)
    if b8 != B:                               # ragged batch: pad only to a pack multiple
        x = jnp.pad(x, ((0, b8 - B), (0, 0)))
    G = b8 // pack                            # number of packed rows
    xp = x.reshape(G, L0)                     # free row-major view, lane-dense

    # --- one-time layout prep (tiny: <=128x128 matrices) ----------------------
    eye = jnp.eye(pack, dtype=dt)
    w1_bd = jnp.kron(eye, jnp.transpose(w1).astype(dt))   # (L0, L1) block-diag W1^T
    w2_bd = jnp.kron(eye, jnp.transpose(w2).astype(dt))   # (L1, L2) block-diag W2^T
    b1_p = jnp.tile(b1.astype(dt), pack).reshape(1, L1)
    b2_p = jnp.tile(b2.astype(dt), pack).reshape(1, L2)

    # --- batch tiling over packed rows ----------------------------------------
    block_g = max(8, block_b // pack)         # packed rows per tile (cap)
    if G < 16:
        tb_g = G                              # single full-extent tile (tiny batch)
    else:
        # guarantee >= 2 grid steps so both v7x TensorCores get work
        tb_g = min(block_g, _round_up(pl.cdiv(G, 2), 8))
    n_tiles = pl.cdiv(G, tb_g)                # Pallas handles the partial tail tile

    cost = pl.CostEstimate(
        flops=2 * G * (L0 * L1 + L1 * L2),
        transcendentals=G * L2,                              # sigmoid
        bytes_accessed=4 * (G * L0 + L0 * L1 + L1
                            + L1 * L2 + L2 + G * L2),
    )

    out = pl.pallas_call(
        _mlp_kernel,
        out_shape=jax.ShapeDtypeStruct((G, L2), dt),
        grid_spec=pltpu.PrefetchScalarGridSpec(
            num_scalar_prefetch=0,
            grid=(n_tiles,),
            in_specs=[
                pl.BlockSpec((tb_g, L0), lambda i: (i, 0)),   # packed x: streamed
                pl.BlockSpec((L0, L1), lambda i: (0, 0)),     # block-diag W1^T: resident
                pl.BlockSpec((1, L1), lambda i: (0, 0)),      # tiled b1: resident
                pl.BlockSpec((L1, L2), lambda i: (0, 0)),     # block-diag W2^T: resident
                pl.BlockSpec((1, L2), lambda i: (0, 0)),      # tiled b2: resident
            ],
            out_specs=pl.BlockSpec((tb_g, L2), lambda i: (i, 0)),
        ),
        compiler_params=pltpu.CompilerParams(
            dimension_semantics=("parallel",),                # megacore on v7x
        ),
        cost_estimate=cost,
    )(xp, w1_bd, b1_p, w2_bd, b2_p)

    # unpack: (G, pack*n2) -> (b8, n2) is a free row-major view; drop pad rows.
    return out.reshape(b8, n2)[:B]


def reference_forward(x, w1, b1, w2, b2):
    h = jnp.maximum(x @ w1.T + b1, 0.0)
    return jax.nn.sigmoid(h @ w2.T + b2)


if __name__ == "__main__":
    # Module defaults: n0=16, n1=16, n2=3
    n0, n1, n2 = 16, 16, 3

    key = jax.random.PRNGKey(0)
    kx, kw1, kb1, kw2, kb2 = jax.random.split(key, 5)

    # Deterministic synthetic parameters (not a checkpoint load).
    w1 = jax.random.normal(kw1, (n1, n0), dtype=jnp.float32) * 0.1
    b1 = jax.random.normal(kb1, (n1,), dtype=jnp.float32) * 0.1
    w2 = jax.random.normal(kw2, (n2, n1), dtype=jnp.float32) * 0.1
    b2 = jax.random.normal(kb2, (n2,), dtype=jnp.float32) * 0.1

    # B=8: single packed row; B=10: ragged (pad-to-pack path);
    # B=256: multi-tile grid (>=2 steps, exercises the parallel axis).
    for B in (8, 10, 256):
        x = jax.random.normal(kx, (B, n0), dtype=jnp.float32)
        out = jax.block_until_ready(tpt_model_forward(x, w1, b1, w2, b2))
        ref = reference_forward(x, w1, b1, w2, b2)
        assert out.shape == (B, n2), out.shape
        assert jnp.allclose(out, ref, atol=1e-5, rtol=1e-5), f"mismatch (B={B})"

    print("KERNEL_OK")
</pallas_src>

<mosaic_0001>
module attributes {stable_mosaic.version = 11 : i64} {
  func.func @_mlp_kernel(%arg0: i32, %arg1: memref<1x128xf32, #tpu.memory_space<vmem>>, %arg2: memref<128x128xf32, #tpu.memory_space<vmem>>, %arg3: memref<1x128xf32, #tpu.memory_space<vmem>>, %arg4: memref<128x24xf32, #tpu.memory_space<vmem>>, %arg5: memref<1x24xf32, #tpu.memory_space<vmem>>, %arg6: memref<1x24xf32, #tpu.memory_space<vmem>>) attributes {dimension_semantics = [#tpu.dimension_semantics<parallel>], iteration_bounds = array<i64: 1>, scalar_prefetch = 0 : i64, scratch_operands = 0 : i64, tpu.core_type = #tpu.core_type<tc>, window_params = [{transform_indices = @transform_0, window_bounds = array<i64: 1, 128>}, {pipeline_mode = #tpu.pipeline_mode<synchronous>, transform_indices = @transform_1, window_bounds = array<i64: 128, 128>}, {pipeline_mode = #tpu.pipeline_mode<synchronous>, transform_indices = @transform_2, window_bounds = array<i64: 1, 128>}, {pipeline_mode = #tpu.pipeline_mode<synchronous>, transform_indices = @transform_3, window_bounds = array<i64: 128, 24>}, {pipeline_mode = #tpu.pipeline_mode<synchronous>, transform_indices = @transform_4, window_bounds = array<i64: 1, 24>}, {transform_indices = @transform_5, window_bounds = array<i64: 1, 24>}]} {
    %c0 = arith.constant 0 : index
    %c0_0 = arith.constant 0 : index
    %0 = vector.load %arg1[%c0, %c0_0] : memref<1x128xf32, #tpu.memory_space<vmem>>, vector<1x128xf32>
    %c0_1 = arith.constant 0 : index
    %c0_2 = arith.constant 0 : index
    %1 = vector.load %arg2[%c0_1, %c0_2] : memref<128x128xf32, #tpu.memory_space<vmem>>, vector<128x128xf32>
    %cst = arith.constant dense<0.000000e+00> : vector<1x128xf32>
    %2 = tpu.matmul %0, %1, %cst {dimension_numbers = #tpu.dot_dimension_numbers<[1], [0], [0], [1], [0, 0, 1, 1], [], []>} : vector<1x128xf32>, vector<128x128xf32>, vector<1x128xf32> -> vector<1x128xf32>
    %c0_3 = arith.constant 0 : index
    %c0_4 = arith.constant 0 : index
    %3 = vector.load %arg3[%c0_3, %c0_4] : memref<1x128xf32, #tpu.memory_space<vmem>>, vector<1x128xf32>
    %4 = arith.addf %2, %3 : vector<1x128xf32>
    %cst_5 = arith.constant 0.000000e+00 : f32
    %5 = vector.broadcast %cst_5 : f32 to vector<1x128xf32>
    %6 = arith.maximumf %4, %5 : vector<1x128xf32>
    %c0_6 = arith.constant 0 : index
    %c0_7 = arith.constant 0 : index
    %7 = vector.load %arg4[%c0_6, %c0_7] : memref<128x24xf32, #tpu.memory_space<vmem>>, vector<128x24xf32>
    %cst_8 = arith.constant dense<0.000000e+00> : vector<1x24xf32>
    %8 = tpu.matmul %6, %7, %cst_8 {dimension_numbers = #tpu.dot_dimension_numbers<[1], [0], [0], [1], [0, 0, 1, 1], [], []>} : vector<1x128xf32>, vector<128x24xf32>, vector<1x24xf32> -> vector<1x24xf32>
    %c0_9 = arith.constant 0 : index
    %c0_10 = arith.constant 0 : index
    %9 = vector.load %arg5[%c0_9, %c0_10] : memref<1x24xf32, #tpu.memory_space<vmem>>, vector<1x24xf32>
    %10 = arith.addf %8, %9 : vector<1x24xf32>
    %11 = arith.negf %10 : vector<1x24xf32>
    %12 = math.exp %11 : vector<1x24xf32>
    %cst_11 = arith.constant 1.000000e+00 : f32
    %13 = vector.broadcast %cst_11 : f32 to vector<1x24xf32>
    %14 = arith.addf %13, %12 : vector<1x24xf32>
    %15 = arith.divf %13, %14 : vector<1x24xf32>
    %c0_12 = arith.constant 0 : index
    %c0_13 = arith.constant 0 : index
    %16 = vector.load %arg6[%c0_12, %c0_13] : memref<1x24xf32, #tpu.memory_space<vmem>>, vector<1x24xf32>
    tpu.vector_store %arg6[%c0_12, %c0_13], %15 {strides = array<i32>} : memref<1x24xf32, #tpu.memory_space<vmem>>, vector<1x24xf32>,
    return
  }
  func.func @transform_0(%arg0: i32) -> (i32, i32) {
    %c0_i32 = arith.constant 0 : i32
    %c0_i32_0 = arith.constant 0 : i32
    return %arg0, %c0_i32 : i32, i32
  }
  func.func @transform_1(%arg0: i32) -> (i32, i32) {
    %c0_i32 = arith.constant 0 : i32
    %c0_i32_0 = arith.constant 0 : i32
    %c0_i32_1 = arith.constant 0 : i32
    return %c0_i32, %c0_i32_0 : i32, i32
  }
  func.func @transform_2(%arg0: i32) -> (i32, i32) {
    %c0_i32 = arith.constant 0 : i32
    %c0_i32_0 = arith.constant 0 : i32
    %c0_i32_1 = arith.constant 0 : i32
    return %c0_i32, %c0_i32_0 : i32, i32
  }
  func.func @transform_3(%arg0: i32) -> (i32, i32) {
    %c0_i32 = arith.constant 0 : i32
    %c0_i32_0 = arith.constant 0 : i32
    %c0_i32_1 = arith.constant 0 : i32
    return %c0_i32, %c0_i32_0 : i32, i32
  }
  func.func @transform_4(%arg0: i32) -> (i32, i32) {
    %c0_i32 = arith.constant 0 : i32
    %c0_i32_0 = arith.constant 0 : i32
    %c0_i32_1 = arith.constant 0 : i32
    return %c0_i32, %c0_i32_0 : i32, i32
  }
  func.func @transform_5(%arg0: i32) -> (i32, i32) {
    %c0_i32 = arith.constant 0 : i32
    %c0_i32_0 = arith.constant 0 : i32
    return %arg0, %c0_i32 : i32, i32
  }
}

</mosaic_0001>

<llo_original>
// kernel: tile.13
$region0: #{tile.13}
  #allocation0 [shape = 's32[1]{0}', space=sflag, size = 0x4, scoped, tag = 'scoped memory for tile.13']
  %s0 = inlined_call_operand.vmem [shape: f32[16], index: 0, kind: input, shape index: {}]
  %s1 = inlined_call_operand.vmem [shape: f32[8,16], index: 1, kind: output, shape index: {}]
  // Predicated region
  $region2: #{tile.13} parent=0 // pred_check
    _
  $region3: #{tile.13} parent=0 // pred_check_branch
    %3 = sbr.rel (0) target = $region5
  $region4: #{tile.13} parent=0 // pred_region
    _
  $region5: #{tile.13} parent=0 // pred_fallthru
    _
  %v4 = vld [vmem:[%s0] ss:$0 sm:$0xff]
  %5 = vst [vmem:[%s1] sm:$0xff] %v4

// kernel: tile.14
$region0: #{tile.14}
  %s0 = inlined_call_operand.vmem [shape: f32[8,16], index: 0, kind: input, shape index: {}]
  %s1 = inlined_call_operand.vmem [shape: f32[1,128], index: 1, kind: output, shape index: {}]
  $region1: #{tile.14} parent=0
    #allocation0 [shape = 'u8[4096]{0}', space=vmem, size = 0x1000, scoped, tag = 'scoped mem for output reshape']
    %v2 = vld [vmem:[%s0] sm:$0x1]
    %vm3 = vcmask 130048
    %4 = vst.msk [vmem:[#allocation0] sm:$0x1] %vm3, %v2
    %s5 = scalar_lea.vmem %s0, 7
    %v6 = vld [vmem:[%s5] sm:$0x1]
    %7 = vrot.lane.b32.xlu0 %v6, 112
    %v8 = vpop.permute.xlu0 %7
    %vm9 = vcmask 1048448
    %10 = vst.msk [vmem:[#allocation0] sm:$0x1] %vm9, %v8
    %s11 = scalar_lea.vmem %s0, 6
    %v12 = vld [vmem:[%s11] sm:$0x1]
    %13 = vrot.lane.b32.xlu0 %v12, 96
    %v14 = vpop.permute.xlu0 %13
    %vm15 = vcmask 917248
    %16 = vst.msk [vmem:[#allocation0] sm:$0x1] %vm15, %v14
    %s17 = scalar_lea.vmem %s0, 5
    %v18 = vld [vmem:[%s17] sm:$0x1]
    %19 = vrot.lane.b32.xlu0 %v18, 80
    %v20 = vpop.permute.xlu0 %19
    %vm21 = vcmask 786048
    %22 = vst.msk [vmem:[#allocation0] sm:$0x1] %vm21, %v20
    %s23 = scalar_lea.vmem %s0, 4
    %v24 = vld [vmem:[%s23] sm:$0x1]
    %25 = vrot.lane.b32.xlu0 %v24, 64
    %v26 = vpop.permute.xlu0 %25
    %vm27 = vcmask 654848
    %28 = vst.msk [vmem:[#allocation0] sm:$0x1] %vm27, %v26
    %s29 = scalar_lea.vmem %s0, 3
    %v30 = vld [vmem:[%s29] sm:$0x1]
    %31 = vrot.lane.b32.xlu0 %v30, 48
    %v32 = vpop.permute.xlu0 %31
    %vm33 = vcmask 523648
    %34 = vst.msk [vmem:[#allocation0] sm:$0x1] %vm33, %v32
    %s35 = scalar_lea.vmem %s0, 2
    %v36 = vld [vmem:[%s35] sm:$0x1]
    %37 = vrot.lane.b32.xlu0 %v36, 32
    %v38 = vpop.permute.xlu0 %37
    %vm39 = vcmask 392448
    %40 = vst.msk [vmem:[#allocation0] sm:$0x1] %vm39, %v38
    %s41 = scalar_lea.vmem %s0, 1
    %v42 = vld [vmem:[%s41] sm:$0x1]
    %43 = vrot.lane.b32.xlu0 %v42, 16
    %v44 = vpop.permute.xlu0 %43
    %vm45 = vcmask 261248
    %46 = vst.msk [vmem:[#allocation0] sm:$0x1] %vm45, %v44
    %s48 = sshllo.u32 0, 1
    %v50 = vld [vmem:[#allocation0] sm:%s48]
    %s51 = sshllo.u32 0, 1
    %52 = vst [vmem:[%s1] sm:%s51] %v50

// kernel: tile.18
$region0: #{tile.18}
  #allocation0 [shape = 's32[1]{0}', space=sflag, size = 0x4, scoped, tag = 'scoped memory for tile.18']
  %s0 = inlined_call_operand.vmem [shape: f32[3], index: 0, kind: input, shape index: {}]
  %s1 = inlined_call_operand.vmem [shape: f32[8,3], index: 1, kind: output, shape index: {}]
  // Predicated region
  $region2: #{tile.18} parent=0 // pred_check
    _
  $region3: #{tile.18} parent=0 // pred_check_branch
    %3 = sbr.rel (0) target = $region5
  $region4: #{tile.18} parent=0 // pred_region
    _
  $region5: #{tile.18} parent=0 // pred_fallthru
    _
  %v4 = vld [vmem:[%s0] ss:$0 sm:$0xff]
  %5 = vst [vmem:[%s1] sm:$0xff] %v4

// kernel: tile.19
$region0: #{tile.19}
  %s0 = inlined_call_operand.vmem [shape: f32[8,3], index: 0, kind: input, shape index: {}]
  %s1 = inlined_call_operand.vmem [shape: f32[1,24], index: 1, kind: output, shape index: {}]
  $region1: #{tile.19} parent=0
    #allocation0 [shape = 'u8[4096]{0}', space=vmem, size = 0x1000, scoped, tag = 'scoped mem for output reshape']
    %v2 = vld [vmem:[%s0] sm:$0x1]
    %vm3 = vcmask 23552
    %4 = vst.msk [vmem:[#allocation0] sm:$0x1] %vm3, %v2
    %s5 = scalar_lea.vmem %s0, 7
    %v6 = vld [vmem:[%s5] sm:$0x1]
    %7 = vrot.lane.b32.xlu0 %v6, 21
    %v8 = vpop.permute.xlu0 %7
    %vm9 = vcmask 195752
    %10 = vst.msk [vmem:[#allocation0] sm:$0x1] %vm9, %v8
    %s11 = scalar_lea.vmem %s0, 6
    %v12 = vld [vmem:[%s11] sm:$0x1]
    %13 = vrot.lane.b32.xlu0 %v12, 18
    %v14 = vpop.permute.xlu0 %13
    %vm15 = vcmask 171152
    %16 = vst.msk [vmem:[#allocation0] sm:$0x1] %vm15, %v14
    %s17 = scalar_lea.vmem %s0, 5
    %v18 = vld [vmem:[%s17] sm:$0x1]
    %19 = vrot.lane.b32.xlu0 %v18, 15
    %v20 = vpop.permute.xlu0 %19
    %vm21 = vcmask 146552
    %22 = vst.msk [vmem:[#allocation0] sm:$0x1] %vm21, %v20
    %s23 = scalar_lea.vmem %s0, 4
    %v24 = vld [vmem:[%s23] sm:$0x1]
    %25 = vrot.lane.b32.xlu0 %v24, 12
    %v26 = vpop.permute.xlu0 %25
    %vm27 = vcmask 121952
    %28 = vst.msk [vmem:[#allocation0] sm:$0x1] %vm27, %v26
    %s29 = scalar_lea.vmem %s0, 3
    %v30 = vld [vmem:[%s29] sm:$0x1]
    %31 = vrot.lane.b32.xlu0 %v30, 9
    %v32 = vpop.permute.xlu0 %31
    %vm33 = vcmask 97352
    %34 = vst.msk [vmem:[#allocation0] sm:$0x1] %vm33, %v32
    %s35 = scalar_lea.vmem %s0, 2
    %v36 = vld [vmem:[%s35] sm:$0x1]
    %37 = vrot.lane.b32.xlu0 %v36, 6
    %v38 = vpop.permute.xlu0 %37
    %vm39 = vcmask 72752
    %40 = vst.msk [vmem:[#allocation0] sm:$0x1] %vm39, %v38
    %s41 = scalar_lea.vmem %s0, 1
    %v42 = vld [vmem:[%s41] sm:$0x1]
    %43 = vrot.lane.b32.xlu0 %v42, 3
    %v44 = vpop.permute.xlu0 %43
    %vm45 = vcmask 48152
    %46 = vst.msk [vmem:[#allocation0] sm:$0x1] %vm45, %v44
    %s48 = sshllo.u32 0, 1
    %v50 = vld [vmem:[#allocation0] sm:%s48]
    %s51 = sshllo.u32 0, 1
    %52 = vst [vmem:[%s1] sm:%s51] %v50

// kernel: tpt_model_forward.1
$region0: #{tpt_model_forward.1}
  #allocation0 [shape = 'u32[]', space=smem, size = 0x4, offset = 0x4, fixed_abs, tag = 'smem constant byte address 0x4 - core index']
  #allocation1 [shape = 'u32[144,128]{1,0:T(1,128)}', space=vmem, size = 0x12000, scoped, tag = 'internal scratch']
  %s0 = inlined_call_operand.vmem [shape: f32[1,128], index: 0, kind: input, shape index: {}]
  %s1 = inlined_call_operand.vmem [shape: f32[128,128], index: 1, kind: input, shape index: {}]
  %s2 = inlined_call_operand.vmem [shape: f32[1,128], index: 2, kind: input, shape index: {}]
  %s3 = inlined_call_operand.vmem [shape: f32[128,24], index: 3, kind: input, shape index: {}]
  %s4 = inlined_call_operand.vmem [shape: f32[1,24], index: 4, kind: input, shape index: {}]
  %s5 = inlined_call_operand.vmem [shape: f32[1,24], index: 5, kind: output, shape index: {}]
  %s6 = sld [smem:[#allocation0]]
  $region30: #{tpt_model_forward.1} parent=0
    _
  %s8 = ssub.s32 1, %s6
  %s9 = scalar_select 0, %s8, %s6
  // Predicated region
  $region2: #{tpt_model_forward.1} parent=0 // pred_check
    _
  $region3: #{tpt_model_forward.1} parent=0 // pred_check_branch
    %11 = sbr.rel (0) target = $region5
  $region4: #{tpt_model_forward.1} parent=0 // pred_region
    _
  $region5: #{tpt_model_forward.1} parent=0 // pred_fallthru
    _
  // Predicated region
  $region6: #{tpt_model_forward.1} parent=0 // pred_check
    _
  $region7: #{tpt_model_forward.1} parent=0 // pred_check_branch
    %13 = sbr.rel (0) target = $region9
  $region8: #{tpt_model_forward.1} parent=0 // pred_region
    _
  $region9: #{tpt_model_forward.1} parent=0 // pred_fallthru
    _
  // Predicated region
  $region10: #{tpt_model_forward.1} parent=0 // pred_check
    _
  $region11: #{tpt_model_forward.1} parent=0 // pred_check_branch
    %15 = sbr.rel (0) target = $region13
  $region12: #{tpt_model_forward.1} parent=0 // pred_region
    _
  $region13: #{tpt_model_forward.1} parent=0 // pred_fallthru
    _
  // Predicated region
  $region14: #{tpt_model_forward.1} parent=0 // pred_check
    _
  $region15: #{tpt_model_forward.1} parent=0 // pred_check_branch
    %17 = sbr.rel (0) target = $region17
  $region16: #{tpt_model_forward.1} parent=0 // pred_region
    _
  $region17: #{tpt_model_forward.1} parent=0 // pred_fallthru
    _
  // Predicated region
  $region18: #{tpt_model_forward.1} parent=0 // pred_check
    _
  $region19: #{tpt_model_forward.1} parent=0 // pred_check_branch
    %19 = sbr.rel (0) target = $region21
  $region20: #{tpt_model_forward.1} parent=0 // pred_region
    _
  $region21: #{tpt_model_forward.1} parent=0 // pred_fallthru
    _
  %v20 = vld [vmem:[%s0] sm:$0x1]
  %v21 = vld [vmem:[%s1] sm:$0xff]
  %v22 = vld [vmem:[%s1 + $0x8] sm:$0xff]
  %v23 = vld [vmem:[%s1 + $0x10] sm:$0xff]
  %v24 = vld [vmem:[%s1 + $0x18] sm:$0xff]
  %v25 = vld [vmem:[%s1 + $0x20] sm:$0xff]
  %v26 = vld [vmem:[%s1 + $0x28] sm:$0xff]
  %v27 = vld [vmem:[%s1 + $0x30] sm:$0xff]
  %v28 = vld [vmem:[%s1 + $0x38] sm:$0xff]
  %v29 = vld [vmem:[%s1 + $0x40] sm:$0xff]
  %v30 = vld [vmem:[%s1 + $0x48] sm:$0xff]
  %v31 = vld [vmem:[%s1 + $0x50] sm:$0xff]
  %v32 = vld [vmem:[%s1 + $0x58] sm:$0xff]
  %v33 = vld [vmem:[%s1 + $0x60] sm:$0xff]
  %v34 = vld [vmem:[%s1 + $0x68] sm:$0xff]
  %v35 = vld [vmem:[%s1 + $0x70] sm:$0xff]
  %v36 = vld [vmem:[%s1 + $0x78] sm:$0xff]
  %v37 = vld [vmem:[%s2] sm:$0x1]
  %38 = vmatprep.subr.mxu0 0.0
  %39 = vmatpush1.msra.mxu0 %v21
  %40 = vmatprep.subr.mxu0 0.0
  %41 = vmatpush1.msra.mxu0 %v22
  %42 = vmatprep.subr.mxu0 0.0
  %43 = vmatpush1.msra.mxu0 %v23
  %44 = vmatprep.subr.mxu0 0.0
  %45 = vmatpush1.msra.mxu0 %v24
  %46 = vmatprep.subr.mxu0 0.0
  %47 = vmatpush1.msra.mxu0 %v25
  %48 = vmatprep.subr.mxu0 0.0
  %49 = vmatpush1.msra.mxu0 %v26
  %50 = vmatprep.subr.mxu0 0.0
  %51 = vmatpush1.msra.mxu0 %v27
  %52 = vmatprep.subr.mxu0 0.0
  %53 = vmatpush1.msra.mxu0 %v28
  %54 = vmatprep.subr.mxu0 0.0
  %55 = vmatpush1.msra.mxu0 %v29
  %56 = vmatprep.subr.mxu0 0.0
  %57 = vmatpush1.msra.mxu0 %v30
  %58 = vmatprep.subr.mxu0 0.0
  %59 = vmatpush1.msra.mxu0 %v31
  %60 = vmatprep.subr.mxu0 0.0
  %61 = vmatpush1.msra.mxu0 %v32
  %62 = vmatprep.subr.mxu0 0.0
  %63 = vmatpush1.msra.mxu0 %v33
  %64 = vmatprep.subr.mxu0 0.0
  %65 = vmatpush1.msra.mxu0 %v34
  %66 = vmatprep.subr.mxu0 0.0
  %67 = vmatpush1.msra.mxu0 %v35
  %68 = vmatprep.subr.mxu0 0.0
  %69 = vmatpush1.msra.mxu0 %v36
  %70 = vmatprep.subr.mxu0 0.0
  %71 = vmatpush1.msra.mxu0 0.0
  %72 = vmatprep.subr.mxu0 0.0
  %73 = vmatpush1.msra.mxu0 0.0
  %74 = vmatprep.subr.mxu0 0.0
  %75 = vmatpush1.msra.mxu0 0.0
  %76 = vmatprep.subr.mxu0 0.0
  %77 = vmatpush1.msra.mxu0 0.0
  %78 = vmatprep.subr.mxu0 0.0
  %79 = vmatpush1.msra.mxu0 0.0
  %80 = vmatprep.subr.mxu0 0.0
  %81 = vmatpush1.msra.mxu0 0.0
  %82 = vmatprep.subr.mxu0 0.0
  %83 = vmatpush1.msra.mxu0 0.0
  %84 = vmatprep.subr.mxu0 0.0
  %85 = vmatpush1.msra.mxu0 0.0
  %86 = vmatprep.subr.mxu0 0.0
  %87 = vmatpush1.msra.mxu0 0.0
  %88 = vmatprep.subr.mxu0 0.0
  %89 = vmatpush1.msra.mxu0 0.0
  %90 = vmatprep.subr.mxu0 0.0
  %91 = vmatpush1.msra.mxu0 0.0
  %92 = vmatprep.subr.mxu0 0.0
  %93 = vmatpush1.msra.mxu0 0.0
  %94 = vmatprep.subr.mxu0 0.0
  %95 = vmatpush1.msra.mxu0 0.0
  %96 = vmatprep.subr.mxu0 0.0
  %97 = vmatpush1.msra.mxu0 0.0
  %98 = vmatprep.subr.mxu0 0.0
  %99 = vmatpush1.msra.mxu0 0.0
  %100 = vmatprep.subr.mxu0 0.0
  %101 = vmatpush1.msra.mxu0 0.0
  %102 = vmatprep.mubr.f32.mxu0 0.0
  %103 = vmatmul.mubr.f32.gmra.mrb[0].mxu0 %v20
  %v104 = vpop.f32.mrb[0].mxu0
  %v105 = vadd.f32 %v37, %v104
  %v106 = vpop.f32.mrb[0].mxu0
  %107 = vdwg.mxu0
  %v108 = vmax.f32 %v105, 0.0
  %v109 = vld [vmem:[%s3] sm:$0xff]
  %v110 = vld [vmem:[%s3 + $0x8] sm:$0xff]
  %v111 = vld [vmem:[%s3 + $0x10] sm:$0xff]
  %v112 = vld [vmem:[%s3 + $0x18] sm:$0xff]
  %v113 = vld [vmem:[%s3 + $0x20] sm:$0xff]
  %v114 = vld [vmem:[%s3 + $0x28] sm:$0xff]
  %v115 = vld [vmem:[%s3 + $0x30] sm:$0xff]
  %v116 = vld [vmem:[%s3 + $0x38] sm:$0xff]
  %v117 = vld [vmem:[%s3 + $0x40] sm:$0xff]
  %v118 = vld [vmem:[%s3 + $0x48] sm:$0xff]
  %v119 = vld [vmem:[%s3 + $0x50] sm:$0xff]
  %v120 = vld [vmem:[%s3 + $0x58] sm:$0xff]
  %v121 = vld [vmem:[%s3 + $0x60] sm:$0xff]
  %v122 = vld [vmem:[%s3 + $0x68] sm:$0xff]
  %v123 = vld [vmem:[%s3 + $0x70] sm:$0xff]
  %v124 = vld [vmem:[%s3 + $0x78] sm:$0xff]
  %v125 = vld [vmem:[%s4] sm:$0x1]
  %126 = vmatprep.subr.mxu0 0.0
  %127 = vmatpush1.msra.mxu0 %v109
  %128 = vmatprep.subr.mxu0 0.0
  %129 = vmatpush1.msra.mxu0 %v110
  %130 = vmatprep.subr.mxu0 0.0
  %131 = vmatpush1.msra.mxu0 %v111
  %132 = vmatprep.subr.mxu0 0.0
  %133 = vmatpush1.msra.mxu0 %v112
  %134 = vmatprep.subr.mxu0 0.0
  %135 = vmatpush1.msra.mxu0 %v113
  %136 = vmatprep.subr.mxu0 0.0
  %137 = vmatpush1.msra.mxu0 %v114
  %138 = vmatprep.subr.mxu0 0.0
  %139 = vmatpush1.msra.mxu0 %v115
  %140 = vmatprep.subr.mxu0 0.0
  %141 = vmatpush1.msra.mxu0 %v116
  %142 = vmatprep.subr.mxu0 0.0
  %143 = vmatpush1.msra.mxu0 %v117
  %144 = vmatprep.subr.mxu0 0.0
  %145 = vmatpush1.msra.mxu0 %v118
  %146 = vmatprep.subr.mxu0 0.0
  %147 = vmatpush1.msra.mxu0 %v119
  %148 = vmatprep.subr.mxu0 0.0
  %149 = vmatpush1.msra.mxu0 %v120
  %150 = vmatprep.subr.mxu0 0.0
  %151 = vmatpush1.msra.mxu0 %v121
  %152 = vmatprep.subr.mxu0 0.0
  %153 = vmatpush1.msra.mxu0 %v122
  %154 = vmatprep.subr.mxu0 0.0
  %155 = vmatpush1.msra.mxu0 %v123
  %156 = vmatprep.subr.mxu0 0.0
  %157 = vmatpush1.msra.mxu0 %v124
  %158 = vmatprep.subr.mxu0 0.0
  %159 = vmatpush1.msra.mxu0 0.0
  %160 = vmatprep.subr.mxu0 0.0
  %161 = vmatpush1.msra.mxu0 0.0
  %162 = vmatprep.subr.mxu0 0.0
  %163 = vmatpush1.msra.mxu0 0.0
  %164 = vmatprep.subr.mxu0 0.0
  %165 = vmatpush1.msra.mxu0 0.0
  %166 = vmatprep.subr.mxu0 0.0
  %167 = vmatpush1.msra.mxu0 0.0
  %168 = vmatprep.subr.mxu0 0.0
  %169 = vmatpush1.msra.mxu0 0.0
  %170 = vmatprep.subr.mxu0 0.0
  %171 = vmatpush1.msra.mxu0 0.0
  %172 = vmatprep.subr.mxu0 0.0
  %173 = vmatpush1.msra.mxu0 0.0
  %174 = vmatprep.subr.mxu0 0.0
  %175 = vmatpush1.msra.mxu0 0.0
  %176 = vmatprep.subr.mxu0 0.0
  %177 = vmatpush1.msra.mxu0 0.0
  %178 = vmatprep.subr.mxu0 0.0
  %179 = vmatpush1.msra.mxu0 0.0
  %180 = vmatprep.subr.mxu0 0.0
  %181 = vmatpush1.msra.mxu0 0.0
  %182 = vmatprep.subr.mxu0 0.0
  %183 = vmatpush1.msra.mxu0 0.0
  %184 = vmatprep.subr.mxu0 0.0
  %185 = vmatpush1.msra.mxu0 0.0
  %186 = vmatprep.subr.mxu0 0.0
  %187 = vmatpush1.msra.mxu0 0.0
  %188 = vmatprep.subr.mxu0 0.0
  %189 = vmatpush1.msra.mxu0 0.0
  %190 = vmatprep.mubr.f32.mxu0 0.0
  %191 = vmatmul.mubr.f32.gmra.mrb[0].mxu0 %v108
  %v192 = vpop.f32.mrb[0].mxu0
  %v193 = vadd.f32 %v125, %v192
  %v194 = vpop.f32.mrb[0].mxu0
  %195 = vdwg.mxu0
  %v196 = vxor.u32 %v193, 2147483648
  %v197 = vmul.f32 %v196, 1.442695
  %v198 = vpow.pop %v197
  %v199 = vadd.f32 %v198, 1.0
  %v200 = vrcp.pop %v199
  %v201 = vmul.f32 1.0, %v200
  %vm202 = vcmask 188416
  %203 = vst.msk [vmem:[%s5] sm:$0x1] %vm202, %v201
  // Predicated region
  $region22: #{tpt_model_forward.1} parent=0 // pred_check
    _
  $region23: #{tpt_model_forward.1} parent=0 // pred_check_branch
    %205 = sbr.rel (0) target = $region25
  $region24: #{tpt_model_forward.1} parent=0 // pred_region
    _
  $region25: #{tpt_model_forward.1} parent=0 // pred_fallthru
    _
  // Predicated region
  $region26: #{tpt_model_forward.1} parent=0 // pred_check
    _
  $region27: #{tpt_model_forward.1} parent=0 // pred_check_branch
    %207 = sbr.rel (0) target = $region29
  $region28: #{tpt_model_forward.1} parent=0 // pred_region
    _
  $region29: #{tpt_model_forward.1} parent=0 // pred_fallthru
    _

</llo_original>
